<compile_context>
chip_gen: v7x
topology: tpu7x:2x2x1
jax: 0.10.0
libtpu: 0.0.40
codegen_flags: <defaults>
</compile_context>

<pallas_src>
import math

import jax
import jax.numpy as jnp
from jax.experimental import pallas as pl
from jax.experimental.pallas import tpu as pltpu


def tcl_kernel(up_ref, x_ref, o_ref):
    # up_ref: (1,) f32 in SMEM; x_ref / o_ref: (tm, TN) f32 tiles in VMEM.
    up = up_ref[0]
    r = jnp.maximum(x_ref[...], 0.0)   # relu(x)
    r = up - r                         # up - relu(x)
    r = jnp.maximum(r, 0.0)            # relu(up - relu(x))
    o_ref[...] = up - r                # up - relu(up - relu(x))


def _tile_profile():
    """Per-generation (target tile elems, min tile elems, vmem_limit_bytes)."""
    try:
        kind = jax.devices()[0].device_kind.lower()
    except Exception:
        kind = ""
    min_tile = 512 * 1024                      # 2 MiB f32: amortizes ~0.35us/step overhead
    if ("7x" in kind) or ("v7" in kind) or ("tpu7" in kind):
        # v7x: 3.2 TB/s HBM, 64 MiB physical VMEM but 32 MiB scoped default ->
        # 8 MiB tiles (4 double-buffered bufs = 32 MiB) need a raised limit.
        return 2048 * 1024, min_tile, 48 * 1024 * 1024
    if "v6" in kind:
        # v6e: 4 MiB tiles -> 16 MiB double-buffered, fits 32 MiB default.
        return 1024 * 1024, min_tile, None
    # v5e (16 MiB scoped default) and anything unknown: stay at 2 MiB tiles.
    return 512 * 1024, min_tile, None


def tcl_forward(x, up):
    """x: arbitrary-shape float32 tensor (e.g. NCHW), up: (1,) float32 param."""
    orig_shape = x.shape
    dtype = x.dtype
    total = math.prod(orig_shape)

    # Lane width: widest power-of-two multiple of 128 that divides numel, so
    # no host-side pad/unpad copies are needed for those shapes.
    TN = 1024
    for cand in (1024, 512, 256, 128):
        if total % cand == 0:
            TN = cand
            break

    rows = pl.cdiv(total, TN)
    padded_total = rows * TN

    tm_target_elems, min_tile_elems, vmem_limit = _tile_profile()
    tm = max(8, tm_target_elems // TN)
    min_tm = max(8, min_tile_elems // TN)
    # Keep >= 2 grid blocks when possible (so the "parallel" axis can shard
    # across v7x's two TensorCores) but never shrink below the min tile size.
    while tm > min_tm and rows < 2 * tm:
        tm //= 2
    if rows <= tm:
        tm = rows                      # single full-extent row block

    flat = x.reshape(-1)
    if padded_total != total:
        # Tail pad of < TN elements; only hit when numel is not a multiple
        # of 128 (never for the shapes tested below).
        flat = jnp.pad(flat, (0, padded_total - total))
    x2 = flat.reshape(rows, TN)

    grid = (pl.cdiv(rows, tm),)        # ragged last block handled by Pallas

    out2 = pl.pallas_call(
        tcl_kernel,
        out_shape=jax.ShapeDtypeStruct((rows, TN), dtype),
        grid=grid,
        in_specs=[
            pl.BlockSpec(memory_space=pltpu.MemorySpace.SMEM),  # 'up' scalar
            pl.BlockSpec((tm, TN), lambda i: (i, 0)),
        ],
        out_specs=pl.BlockSpec((tm, TN), lambda i: (i, 0)),
        compiler_params=pltpu.CompilerParams(
            dimension_semantics=("parallel",),
            vmem_limit_bytes=vmem_limit),
    )(up, x2)

    if padded_total != total:
        return out2.reshape(-1)[:total].reshape(orig_shape)
    return out2.reshape(orig_shape)


def tcl_ref(x, up):
    r = jnp.maximum(x, 0.0)
    r = up[0] - r
    r = jnp.maximum(r, 0.0)
    return up[0] - r


if __name__ == "__main__":
    key = jax.random.PRNGKey(0)
    k1, k2 = jax.random.split(key)

    # Deterministic parameter init, matching nn.Parameter(torch.Tensor([4.0]))
    up = jnp.array([4.0], dtype=jnp.float32)

    # Small NCHW input consistent with the module (single-block path).
    x_small = jax.random.normal(k1, (2, 4, 16, 16), dtype=jnp.float32) * 3.0
    y_small = jax.block_until_ready(tcl_forward(x_small, up))
    assert y_small.shape == x_small.shape and y_small.dtype == x_small.dtype
    assert jnp.allclose(y_small, tcl_ref(x_small, up), atol=1e-6), "mismatch (small)"

    # Larger shape exercising the multi-block path with a ragged last block
    # (648 rows of 1024 lanes, tile height 512 -> no padding, no extra copies).
    x_big = jax.random.normal(k2, (8, 64, 36, 36), dtype=jnp.float32) * 3.0
    y_big = jax.block_until_ready(tcl_forward(x_big, up))
    assert y_big.shape == x_big.shape and y_big.dtype == x_big.dtype
    assert jnp.allclose(y_big, tcl_ref(x_big, up), atol=1e-6), "mismatch (big)"

    print("KERNEL_OK")
</pallas_src>

<mosaic_0001>
module attributes {stable_mosaic.version = 11 : i64} {
  func.func @tcl_kernel(%arg0: i32, %arg1: memref<1xf32, #tpu.memory_space<smem>>, %arg2: memref<2x1024xf32, #tpu.memory_space<vmem>>, %arg3: memref<2x1024xf32, #tpu.memory_space<vmem>>) attributes {dimension_semantics = [#tpu.dimension_semantics<parallel>], iteration_bounds = array<i64: 1>, scalar_prefetch = 0 : i64, scratch_operands = 0 : i64, tpu.core_type = #tpu.core_type<tc>, window_params = [{transform_indices = @transform_0, window_bounds = array<i64: 1>}, {transform_indices = @transform_1, window_bounds = array<i64: 2, 1024>}, {transform_indices = @transform_2, window_bounds = array<i64: 2, 1024>}]} {
    %c0 = arith.constant 0 : index
    %0 = memref.load %arg1[%c0] : memref<1xf32, #tpu.memory_space<smem>>
    %c0_0 = arith.constant 0 : index
    %c0_1 = arith.constant 0 : index
    %1 = vector.load %arg2[%c0_0, %c0_1] : memref<2x1024xf32, #tpu.memory_space<vmem>>, vector<2x1024xf32>
    %cst = arith.constant 0.000000e+00 : f32
    %2 = vector.broadcast %cst : f32 to vector<2x1024xf32>
    %3 = arith.maximumf %1, %2 : vector<2x1024xf32>
    %4 = vector.broadcast %0 : f32 to vector<2x1024xf32>
    %5 = arith.subf %4, %3 : vector<2x1024xf32>
    %cst_2 = arith.constant 0.000000e+00 : f32
    %6 = vector.broadcast %cst_2 : f32 to vector<2x1024xf32>
    %7 = arith.maximumf %5, %6 : vector<2x1024xf32>
    %8 = vector.broadcast %0 : f32 to vector<2x1024xf32>
    %9 = arith.subf %8, %7 : vector<2x1024xf32>
    %c0_3 = arith.constant 0 : index
    %c0_4 = arith.constant 0 : index
    %10 = vector.load %arg3[%c0_3, %c0_4] : memref<2x1024xf32, #tpu.memory_space<vmem>>, vector<2x1024xf32>
    tpu.vector_store %arg3[%c0_3, %c0_4], %9 {strides = array<i32>} : memref<2x1024xf32, #tpu.memory_space<vmem>>, vector<2x1024xf32>,
    return
  }
  func.func @transform_0(%arg0: i32) -> i32 {
    %c0_i32 = arith.constant 0 : i32
    %c0_i32_0 = arith.constant 0 : i32
    return %c0_i32 : i32
  }
  func.func @transform_1(%arg0: i32) -> (i32, i32) {
    %c0_i32 = arith.constant 0 : i32
    %c0_i32_0 = arith.constant 0 : i32
    return %arg0, %c0_i32 : i32, i32
  }
  func.func @transform_2(%arg0: i32) -> (i32, i32) {
    %c0_i32 = arith.constant 0 : i32
    %c0_i32_0 = arith.constant 0 : i32
    return %arg0, %c0_i32 : i32, i32
  }
}

</mosaic_0001>

<llo_original>
// kernel: tpu_custom_call.1
$region0: #{tpu_custom_call.1}
  #allocation0 [shape = 'u32[]', space=smem, size = 0x4, offset = 0x4, fixed_abs, tag = 'smem constant byte address 0x4 - core index']
  #allocation1 [shape = 'u32[144,128]{1,0:T(1,128)}', space=vmem, size = 0x12000, scoped, tag = 'internal scratch']
  #allocation2 [shape = 'f32[1]{0:T(128)S(6)}', space=smem, size = 0x200, scoped, tag = 'scoped memory for tpu_custom_call.1']
  %s0 = inlined_call_operand.<no memory space> [shape: f32[1], index: 0, kind: input, shape index: {}]
  %s1 = inlined_call_operand.hbm [shape: f32[2,1024], index: 1, kind: input, shape index: {}]
  %s2 = inlined_call_operand.hbm [shape: f32[2,1024], index: 2, kind: output, shape index: {}]
  %s3 = sld [smem:[#allocation0]]
  $region22: #{tpu_custom_call.1} parent=0
    _
  %s5 = ssub.s32 1, %s3
  %s6 = scalar_select 0, %s5, %s3
  %7 = sst [smem:[#allocation2]] %s0
  $region1: #{tpu_custom_call.1} parent=0
    #allocation3 [shape = 'u8[8192]{0}', space=vmem, size = 0x2000, scoped, tag = 'input window, operand 1, single buffered']
    #allocation4 [shape = 's32[1]{0}', space=sflag, size = 0x4, scoped, tag = 'scoped memory for tpu_custom_call.1']
    #allocation5 [shape = 's32[1]{0}', space=sflag, size = 0x4, scoped, tag = 'scoped memory for tpu_custom_call.1']
    #allocation6 [shape = 'u8[8192]{0}', space=vmem, size = 0x2000, scoped, tag = 'output window, operand 0, single buffered']
    %8 = vsyncpa [#allocation4], 0
    %9 = vsyncpa [#allocation5], 0
    // Predicated region
    $region2: #{tpu_custom_call.1} parent=1 // pred_check
      _
    $region3: #{tpu_custom_call.1} parent=1 // pred_check_branch
      %11 = sbr.rel (0) target = $region5
    $region4: #{tpu_custom_call.1} parent=1 // pred_region
      _
    $region5: #{tpu_custom_call.1} parent=1 // pred_fallthru
      _
    // Predicated region
    $region6: #{tpu_custom_call.1} parent=1 // pred_check
      _
    $region7: #{tpu_custom_call.1} parent=1 // pred_check_branch
      %13 = sbr.rel (0) target = $region9
    $region8: #{tpu_custom_call.1} parent=1 // pred_region
      %s15 = ssub.s32 256, 256
      %16 = vsyncadd [#allocation4], %s15
      %s18 = sshll.u32 [#allocation3], 4
      %s19 = int_to_ptr.vmem [resolvable:$true] %s18
      %21 = dma.hbm_to_vmem [thread:$0]  %s1, 256, %s19, [#allocation4]
    $region9: #{tpu_custom_call.1} parent=1 // pred_fallthru
      _
    // Predicated region
    $region10: #{tpu_custom_call.1} parent=1 // pred_check
      _
    $region11: #{tpu_custom_call.1} parent=1 // pred_check_branch
      %23 = sbr.rel (0) target = $region13
    $region12: #{tpu_custom_call.1} parent=1 // pred_region
      %24 = dma.done [#allocation4], 256
    $region13: #{tpu_custom_call.1} parent=1 // pred_fallthru
      _
    %s25 = sld [smem:[#allocation2]]
    %v26 = vld [vmem:[#allocation3] sm:$0xff]
    %v27 = vld [vmem:[#allocation3 + $0x8] sm:$0xff]
    %v28 = vmax.f32 %v26, 0.0
    %v29 = vmax.f32 %v27, 0.0
    %v30 = vstv %s25
    %v31 = vsub.f32 %v30, %v28
    %v32 = vsub.f32 %v30, %v29
    %v33 = vmax.f32 %v31, 0.0
    %v34 = vmax.f32 %v32, 0.0
    %v35 = vsub.f32 %v30, %v33
    %v36 = vsub.f32 %v30, %v34
    %37 = vst [vmem:[#allocation6] sm:$0xff] %v35
    %38 = vst [vmem:[#allocation6 + $0x8] sm:$0xff] %v36
    // Predicated region
    $region14: #{tpu_custom_call.1} parent=1 // pred_check
      _
    $region15: #{tpu_custom_call.1} parent=1 // pred_check_branch
      %40 = sbr.rel (0) target = $region17
    $region16: #{tpu_custom_call.1} parent=1 // pred_region
      %s42 = ssub.s32 256, 256
      %43 = vsyncadd [#allocation5], %s42
      %s45 = sshll.u32 [#allocation6], 4
      %s46 = int_to_ptr.vmem [resolvable:$true] %s45
      %48 = dma.vmem_to_hbm [thread:$0]  %s46, 256, %s2, [#allocation5]
    $region17: #{tpu_custom_call.1} parent=1 // pred_fallthru
      _
    // Predicated region
    $region18: #{tpu_custom_call.1} parent=1 // pred_check
      _
    $region19: #{tpu_custom_call.1} parent=1 // pred_check_branch
      %50 = sbr.rel (0) target = $region21
    $region20: #{tpu_custom_call.1} parent=1 // pred_region
      %51 = dma.done [#allocation5], 256
    $region21: #{tpu_custom_call.1} parent=1 // pred_fallthru
      _
    %52 = vsyncpa [#allocation4], 1
    %53 = vsyncpa [#allocation5], 1

</llo_original>
